<compile_context>
chip_gen: v7x
topology: tpu7x:2x2x1
jax: 0.10.0
libtpu: 0.0.40
codegen_flags: <defaults>
</compile_context>

<pallas_src>
import functools

import jax
import jax.numpy as jnp
from jax.experimental import pallas as pl
from jax.experimental.pallas import tpu as pltpu

EPS = 1e-5  # BatchNorm1d default eps

_COMPILER_PARAMS = pltpu.CompilerParams(
    dimension_semantics=("parallel", "parallel"),
    vmem_limit_bytes=32 * 1024 * 1024,
)


# ----------------------------------------------------------------------------
# Pallas kernels
# ----------------------------------------------------------------------------
def _t_base(t_tile, static_base):
    if static_base:
        return 0
    return pl.multiple_of(pl.program_id(1) * t_tile, t_tile)


def _conv_accumulate(xpad_ref, w_ref, base, offsets, pad_left, t_tile):
    """Fused multi-branch dilated conv as a sum of tap matmuls.

    xpad_ref: (1, T_pad, Cin) f32   w_ref: (n_taps, Cin, Cout) (bf16 or f32)
    Returns (t_tile, Cout) f32 accumulator.
    """
    cout = w_ref.shape[-1]
    acc = jnp.zeros((t_tile, cout), jnp.float32)
    for i, off in enumerate(offsets):  # static unroll over union of tap offsets
        xs = xpad_ref[0, pl.ds(base + (pad_left + off), t_tile), :]
        acc = acc + jnp.dot(xs.astype(w_ref.dtype), w_ref[i],
                            preferred_element_type=jnp.float32)
    return acc


def _fused_layer_kernel(xpad_ref, w_ref, shift_ref, out_ref, *,
                        offsets, pad_left, t_tile, static_base):
    """All branches of one layer: conv + folded BN + ReLU, lane-dense output."""
    base = _t_base(t_tile, static_base)
    acc = _conv_accumulate(xpad_ref, w_ref, base, offsets, pad_left, t_tile)
    acc = jnp.maximum(acc + shift_ref[...], 0.0)
    out_ref[...] = acc[None].astype(out_ref.dtype)


def _fused_layer_res_ds_kernel(xpad_ref, w_ref, shift_ref, xres_ref, wd_ref, bd_ref,
                               out_ref, *, offsets, pad_left, res_off, t_tile,
                               static_base):
    """Layer-1 branches + 1x1 downsample residual + final ReLU, fully fused."""
    base = _t_base(t_tile, static_base)
    acc = _conv_accumulate(xpad_ref, w_ref, base, offsets, pad_left, t_tile)
    acc = jnp.maximum(acc + shift_ref[...], 0.0)            # per-branch ReLUs
    xres = xres_ref[0, pl.ds(base + res_off, t_tile), :]
    res = jnp.dot(xres.astype(wd_ref.dtype), wd_ref[...],
                  preferred_element_type=jnp.float32) + bd_ref[...]
    out_ref[...] = jnp.maximum(acc + res, 0.0)[None].astype(out_ref.dtype)


def _fused_layer_res_id_kernel(xpad_ref, w_ref, shift_ref, xres_ref, out_ref, *,
                               offsets, pad_left, res_off, t_tile, static_base):
    """Layer-1 branches + identity residual + final ReLU (no eye matmul)."""
    base = _t_base(t_tile, static_base)
    acc = _conv_accumulate(xpad_ref, w_ref, base, offsets, pad_left, t_tile)
    acc = jnp.maximum(acc + shift_ref[...], 0.0)
    res = xres_ref[0, pl.ds(base + res_off, t_tile), :].astype(jnp.float32)
    out_ref[...] = jnp.maximum(acc + res, 0.0)[None].astype(out_ref.dtype)


# ----------------------------------------------------------------------------
# pallas_call wrappers
# ----------------------------------------------------------------------------
def _choose_t_tile(T, cout):
    budget = 128 * 1024  # keep the f32 accumulator roughly within the vreg file
    for cand in (512, 256, 128, 64, 32, 16, 8):
        if T % cand == 0 and cand * cout * 4 <= budget:
            return cand
    for cand in (512, 256, 128, 64, 32, 16, 8):
        if T % cand == 0:
            return cand
    return T


def _conv_specs(T_pad, Cin, n_taps, Cout, t_tile):
    in_specs = [
        pl.BlockSpec((1, T_pad, Cin), lambda b, t: (b, 0, 0)),     # resident across t
        pl.BlockSpec((n_taps, Cin, Cout), lambda b, t: (0, 0, 0)),
        pl.BlockSpec((1, Cout), lambda b, t: (0, 0)),
    ]
    out_spec = pl.BlockSpec((1, t_tile, Cout), lambda b, t: (b, t, 0))
    return in_specs, out_spec


def fused_conv_layer(xpad, w, shift, *, offsets, pad_left, T, t_tile, out_dtype):
    B, T_pad, Cin = xpad.shape
    n_taps, _, Cout = w.shape
    nt = T // t_tile
    kern = functools.partial(_fused_layer_kernel, offsets=offsets, pad_left=pad_left,
                             t_tile=t_tile, static_base=(nt == 1))
    in_specs, out_spec = _conv_specs(T_pad, Cin, n_taps, Cout, t_tile)
    return pl.pallas_call(
        kern,
        out_shape=jax.ShapeDtypeStruct((B, T, Cout), out_dtype),
        grid_spec=pltpu.PrefetchScalarGridSpec(
            num_scalar_prefetch=0, grid=(B, nt),
            in_specs=in_specs, out_specs=out_spec),
        compiler_params=_COMPILER_PARAMS,
    )(xpad, w, shift)


def fused_conv_residual_layer(xpad, w, shift, xres, wd, bd, *,
                              offsets, pad_left, res_off, T, t_tile):
    B, T_pad, Cin = xpad.shape
    n_taps, _, Cout = w.shape
    _, T_res_pad, Cres = xres.shape
    nt = T // t_tile
    in_specs, out_spec = _conv_specs(T_pad, Cin, n_taps, Cout, t_tile)
    if wd is None:
        kern = functools.partial(_fused_layer_res_id_kernel, offsets=offsets,
                                 pad_left=pad_left, res_off=res_off, t_tile=t_tile,
                                 static_base=(nt == 1))
        in_specs = in_specs + [pl.BlockSpec((1, T_res_pad, Cres), lambda b, t: (b, 0, 0))]
        args = (xpad, w, shift, xres)
    else:
        kern = functools.partial(_fused_layer_res_ds_kernel, offsets=offsets,
                                 pad_left=pad_left, res_off=res_off, t_tile=t_tile,
                                 static_base=(nt == 1))
        in_specs = in_specs + [
            pl.BlockSpec((1, T_res_pad, Cres), lambda b, t: (b, 0, 0)),
            pl.BlockSpec((Cres, Cout), lambda b, t: (0, 0)),
            pl.BlockSpec((1, Cout), lambda b, t: (0, 0)),
        ]
        args = (xpad, w, shift, xres, wd, bd)
    return pl.pallas_call(
        kern,
        out_shape=jax.ShapeDtypeStruct((B, T, Cout), jnp.float32),
        grid_spec=pltpu.PrefetchScalarGridSpec(
            num_scalar_prefetch=0, grid=(B, nt),
            in_specs=in_specs, out_specs=out_spec),
        compiler_params=_COMPILER_PARAMS,
    )(*args)


# ----------------------------------------------------------------------------
# Parameter construction / BN folding (glue, plain JAX)
# ----------------------------------------------------------------------------
def init_branch_params(key, cin, cout_b, k):
    k1, k2, k3, k4, k5, k6 = jax.random.split(key, 6)
    return dict(
        w=0.1 * jax.random.normal(k1, (cout_b, cin, k), jnp.float32),      # Conv1d weight (O, I, K)
        b=0.1 * jax.random.normal(k2, (cout_b,), jnp.float32),             # Conv1d bias
        gamma=1.0 + 0.1 * jax.random.normal(k3, (cout_b,), jnp.float32),   # BN weight
        beta=0.1 * jax.random.normal(k4, (cout_b,), jnp.float32),          # BN bias
        rm=0.1 * jax.random.normal(k5, (cout_b,), jnp.float32),            # BN running_mean
        rv=jnp.abs(jax.random.normal(k6, (cout_b,), jnp.float32)) + 0.5,   # BN running_var
    )


def fold_bn(p):
    """Fold BatchNorm (eval) into conv weights: y = x_taps @ W_eff + shift, then ReLU."""
    scale = p["gamma"] / jnp.sqrt(p["rv"] + EPS)
    w_eff = jnp.transpose(p["w"], (2, 1, 0)) * scale[None, None, :]   # (K, Cin, Cout_b)
    shift = (p["b"] - p["rm"]) * scale + p["beta"]                    # (Cout_b,)
    return w_eff, shift


def build_fused_layer(branch_params, kernel_sizes, dilation, padding, mxu_dtype):
    """Merge all branches into one zero-padded tap-union weight tensor."""
    folded = [fold_bn(p) for p in branch_params]
    cin = folded[0][0].shape[1]
    cout_b = folded[0][0].shape[2]
    n_br = len(kernel_sizes)
    cout = cout_b * n_br

    offs_per_branch = []
    for k, pad in zip(kernel_sizes, padding):
        # PyTorch Chomp1d(symm) asserts even chomp; equal-length concat needs p=(k-1)*d.
        assert pad % 2 == 0, "symmetric chomp requires even padding"
        assert pad == (k - 1) * dilation, "branch padding must be (k-1)*dilation"
        half = pad // 2
        offs_per_branch.append([j * dilation - half for j in range(k)])

    union = sorted({o for offs in offs_per_branch for o in offs})
    idx_of = {o: i for i, o in enumerate(union)}

    W = jnp.zeros((len(union), cin, cout), jnp.float32)
    shifts = []
    for br, ((w_eff, shift), offs) in enumerate(zip(folded, offs_per_branch)):
        for j, o in enumerate(offs):
            W = W.at[idx_of[o], :, br * cout_b:(br + 1) * cout_b].set(w_eff[j])
        shifts.append(shift)

    return dict(
        w=W.astype(mxu_dtype),
        shift=jnp.concatenate(shifts).reshape(1, cout),
        offsets=tuple(int(o) for o in union),
        pad_left=int(max(0, -min(union))),
        pad_right=int(max(0, max(union))),
    )


class MultibranchTemporalBlockPallas:
    def __init__(self, key, n_inputs, n_outputs, kernel_sizes, dilation, padding,
                 mxu_dtype=jnp.bfloat16):
        self.kernel_sizes = tuple(kernel_sizes)
        self.num_kernels = len(self.kernel_sizes)
        assert n_outputs % self.num_kernels == 0
        self.n_outputs_branch = n_outputs // self.num_kernels
        self.n_outputs = n_outputs
        self.dilation = dilation
        self.padding = tuple(padding)
        self.mxu_dtype = mxu_dtype

        keys = jax.random.split(key, 2 * self.num_kernels + 1)
        self.params0 = [init_branch_params(keys[i], n_inputs, self.n_outputs_branch, k)
                        for i, k in enumerate(self.kernel_sizes)]
        self.params1 = [init_branch_params(keys[self.num_kernels + i], n_outputs,
                                           self.n_outputs_branch, k)
                        for i, k in enumerate(self.kernel_sizes)]
        self.layer0 = build_fused_layer(self.params0, self.kernel_sizes, dilation,
                                        self.padding, mxu_dtype)
        self.layer1 = build_fused_layer(self.params1, self.kernel_sizes, dilation,
                                        self.padding, mxu_dtype)

        if n_inputs // self.num_kernels != n_outputs:   # same predicate as the PyTorch module
            kd1, kd2 = jax.random.split(keys[-1])
            self.wd_raw = 0.1 * jax.random.normal(kd1, (n_outputs, n_inputs, 1), jnp.float32)
            self.bd_raw = 0.1 * jax.random.normal(kd2, (n_outputs,), jnp.float32)
            self.wd = jnp.transpose(self.wd_raw[:, :, 0], (1, 0)).astype(mxu_dtype)  # (Cin, Cout)
            self.bd = self.bd_raw.reshape(1, n_outputs)
        else:
            assert n_inputs == n_outputs, "identity residual requires matching channel counts"
            self.wd_raw = None
            self.bd_raw = None
            self.wd = None
            self.bd = None

    def __call__(self, x_bct):
        # x_bct: PyTorch layout (B, C_in, T)
        x_btc = jnp.transpose(x_bct, (0, 2, 1)).astype(jnp.float32)
        B, T, _ = x_btc.shape
        t_tile = _choose_t_tile(T, self.n_outputs)

        l0, l1 = self.layer0, self.layer1
        # Pad once per layer with the max halo; each tap uses a static offset into it.
        xpad0 = jnp.pad(x_btc, ((0, 0), (l0["pad_left"], l0["pad_right"]), (0, 0)))
        out0 = fused_conv_layer(xpad0, l0["w"], l0["shift"], offsets=l0["offsets"],
                                pad_left=l0["pad_left"], T=T, t_tile=t_tile,
                                out_dtype=jnp.float32)
        # dropout0 / dropout1 are identity in eval mode.
        xpad1 = jnp.pad(out0, ((0, 0), (l1["pad_left"], l1["pad_right"]), (0, 0)))
        # Residual (reused from xpad0 at offset pad_left) is fused into the layer-1 kernel.
        y = fused_conv_residual_layer(
            xpad1, l1["w"], l1["shift"], xpad0, self.wd, self.bd,
            offsets=l1["offsets"], pad_left=l1["pad_left"], res_off=l0["pad_left"],
            T=T, t_tile=t_tile)
        return jnp.transpose(y, (0, 2, 1))  # back to (B, C_out, T)


# ----------------------------------------------------------------------------
# Pure-JAX reference (lax.conv) for correctness check
# ----------------------------------------------------------------------------
def ref_branch(x_bct, p, dilation, padding):
    y = jax.lax.conv_general_dilated(
        x_bct, p["w"], window_strides=(1,), padding=[(padding, padding)],
        rhs_dilation=(dilation,), dimension_numbers=("NCH", "OIH", "NCH"))
    y = y + p["b"][None, :, None]
    y = (y - p["rm"][None, :, None]) / jnp.sqrt(p["rv"][None, :, None] + EPS) \
        * p["gamma"][None, :, None] + p["beta"][None, :, None]
    c = padding // 2
    y = y[:, :, c:y.shape[2] - c]  # symmetric chomp
    return jnp.maximum(y, 0.0)


def ref_forward(mod, x_bct):
    outs = [ref_branch(x_bct, p, mod.dilation, pad)
            for p, pad in zip(mod.params0, mod.padding)]
    out0 = jnp.concatenate(outs, axis=1)
    outs = [ref_branch(out0, p, mod.dilation, pad)
            for p, pad in zip(mod.params1, mod.padding)]
    out1 = jnp.concatenate(outs, axis=1)
    if mod.wd_raw is not None:
        res = jax.lax.conv_general_dilated(
            x_bct, mod.wd_raw, (1,), [(0, 0)],
            dimension_numbers=("NCH", "OIH", "NCH")) + mod.bd_raw[None, :, None]
    else:
        res = x_bct
    return jnp.maximum(out1 + res, 0.0)


# ----------------------------------------------------------------------------
if __name__ == "__main__":
    key = jax.random.PRNGKey(0)
    k_x, k_p = jax.random.split(key)

    B, Cin, T = 2, 8, 16
    Cout = 12
    kernel_sizes = (3, 5, 7)
    dilation = 2
    padding = tuple((k - 1) * dilation for k in kernel_sizes)  # (4, 8, 12)

    x = jax.random.normal(k_x, (B, Cin, T), jnp.float32)

    # f32 MXU path: tight structural check of the fused kernels.
    mod_f32 = MultibranchTemporalBlockPallas(k_p, Cin, Cout, kernel_sizes, dilation,
                                             padding, mxu_dtype=jnp.float32)
    out_f32 = jax.block_until_ready(mod_f32(x))
    ref = ref_forward(mod_f32, x)
    assert out_f32.shape == (B, Cout, T), out_f32.shape
    err_f32 = float(jnp.max(jnp.abs(out_f32 - ref)))
    assert err_f32 < 1e-4, f"f32 path max abs err {err_f32}"

    # bf16 MXU path (production default): same params, looser tolerance.
    mod_bf16 = MultibranchTemporalBlockPallas(k_p, Cin, Cout, kernel_sizes, dilation,
                                              padding, mxu_dtype=jnp.bfloat16)
    out_bf16 = jax.block_until_ready(mod_bf16(x))
    err_bf16 = float(jnp.max(jnp.abs(out_bf16 - ref)))
    assert err_bf16 < 1e-1, f"bf16 path max abs err {err_bf16}"

    print("KERNEL_OK")
</pallas_src>

<mosaic_0001>
module attributes {stable_mosaic.version = 11 : i64} {
  func.func @_fused_layer_kernel(%arg0: i32, %arg1: i32, %arg2: memref<1x28x8xf32, #tpu.memory_space<vmem>>, %arg3: memref<7x8x12xf32, #tpu.memory_space<vmem>>, %arg4: memref<1x12xf32, #tpu.memory_space<vmem>>, %arg5: memref<1x16x12xf32, #tpu.memory_space<vmem>>) attributes {dimension_semantics = [#tpu.dimension_semantics<parallel>, #tpu.dimension_semantics<parallel>], iteration_bounds = array<i64: 2, 1>, scalar_prefetch = 0 : i64, scratch_operands = 0 : i64, tpu.core_type = #tpu.core_type<tc>, window_params = [{transform_indices = @transform_0, window_bounds = array<i64: 1, 28, 8>}, {pipeline_mode = #tpu.pipeline_mode<synchronous>, transform_indices = @transform_1, window_bounds = array<i64: 7, 8, 12>}, {pipeline_mode = #tpu.pipeline_mode<synchronous>, transform_indices = @transform_2, window_bounds = array<i64: 1, 12>}, {transform_indices = @transform_3, window_bounds = array<i64: 1, 16, 12>}]} {
    %cst = arith.constant 0.000000e+00 : f32
    %0 = vector.broadcast %cst : f32 to vector<16x12xf32>
    %c0 = arith.constant 0 : index
    %c0_0 = arith.constant 0 : index
    %c0_1 = arith.constant 0 : index
    %1 = vector.load %arg2[%c0, %c0_0, %c0_1] : memref<1x28x8xf32, #tpu.memory_space<vmem>>, vector<1x16x8xf32>
    %2 = vector.shape_cast %1 : vector<1x16x8xf32> to vector<16x8xf32>
    %c0_2 = arith.constant 0 : index
    %c0_3 = arith.constant 0 : index
    %c0_4 = arith.constant 0 : index
    %3 = vector.load %arg3[%c0_2, %c0_3, %c0_4] : memref<7x8x12xf32, #tpu.memory_space<vmem>>, vector<1x8x12xf32>
    %4 = vector.shape_cast %3 : vector<1x8x12xf32> to vector<8x12xf32>
    %cst_5 = arith.constant dense<0.000000e+00> : vector<16x12xf32>
    %5 = tpu.matmul %2, %4, %cst_5 {dimension_numbers = #tpu.dot_dimension_numbers<[1], [0], [0], [1], [0, 0, 1, 1], [], []>} : vector<16x8xf32>, vector<8x12xf32>, vector<16x12xf32> -> vector<16x12xf32>
    %6 = arith.addf %0, %5 : vector<16x12xf32>
    %c0_6 = arith.constant 0 : index
    %c2 = arith.constant 2 : index
    %c0_7 = arith.constant 0 : index
    %7 = vector.load %arg2[%c0_6, %c2, %c0_7] : memref<1x28x8xf32, #tpu.memory_space<vmem>>, vector<1x16x8xf32>
    %8 = vector.shape_cast %7 : vector<1x16x8xf32> to vector<16x8xf32>
    %c1 = arith.constant 1 : index
    %c0_8 = arith.constant 0 : index
    %c0_9 = arith.constant 0 : index
    %9 = vector.load %arg3[%c1, %c0_8, %c0_9] : memref<7x8x12xf32, #tpu.memory_space<vmem>>, vector<1x8x12xf32>
    %10 = vector.shape_cast %9 : vector<1x8x12xf32> to vector<8x12xf32>
    %cst_10 = arith.constant dense<0.000000e+00> : vector<16x12xf32>
    %11 = tpu.matmul %8, %10, %cst_10 {dimension_numbers = #tpu.dot_dimension_numbers<[1], [0], [0], [1], [0, 0, 1, 1], [], []>} : vector<16x8xf32>, vector<8x12xf32>, vector<16x12xf32> -> vector<16x12xf32>
    %12 = arith.addf %6, %11 : vector<16x12xf32>
    %c0_11 = arith.constant 0 : index
    %c4 = arith.constant 4 : index
    %c0_12 = arith.constant 0 : index
    %13 = vector.load %arg2[%c0_11, %c4, %c0_12] : memref<1x28x8xf32, #tpu.memory_space<vmem>>, vector<1x16x8xf32>
    %14 = vector.shape_cast %13 : vector<1x16x8xf32> to vector<16x8xf32>
    %c2_13 = arith.constant 2 : index
    %c0_14 = arith.constant 0 : index
    %c0_15 = arith.constant 0 : index
    %15 = vector.load %arg3[%c2_13, %c0_14, %c0_15] : memref<7x8x12xf32, #tpu.memory_space<vmem>>, vector<1x8x12xf32>
    %16 = vector.shape_cast %15 : vector<1x8x12xf32> to vector<8x12xf32>
    %cst_16 = arith.constant dense<0.000000e+00> : vector<16x12xf32>
    %17 = tpu.matmul %14, %16, %cst_16 {dimension_numbers = #tpu.dot_dimension_numbers<[1], [0], [0], [1], [0, 0, 1, 1], [], []>} : vector<16x8xf32>, vector<8x12xf32>, vector<16x12xf32> -> vector<16x12xf32>
    %18 = arith.addf %12, %17 : vector<16x12xf32>
    %c0_17 = arith.constant 0 : index
    %c6 = arith.constant 6 : index
    %c0_18 = arith.constant 0 : index
    %19 = vector.load %arg2[%c0_17, %c6, %c0_18] : memref<1x28x8xf32, #tpu.memory_space<vmem>>, vector<1x16x8xf32>
    %20 = vector.shape_cast %19 : vector<1x16x8xf32> to vector<16x8xf32>
    %c3 = arith.constant 3 : index
    %c0_19 = arith.constant 0 : index
    %c0_20 = arith.constant 0 : index
    %21 = vector.load %arg3[%c3, %c0_19, %c0_20] : memref<7x8x12xf32, #tpu.memory_space<vmem>>, vector<1x8x12xf32>
    %22 = vector.shape_cast %21 : vector<1x8x12xf32> to vector<8x12xf32>
    %cst_21 = arith.constant dense<0.000000e+00> : vector<16x12xf32>
    %23 = tpu.matmul %20, %22, %cst_21 {dimension_numbers = #tpu.dot_dimension_numbers<[1], [0], [0], [1], [0, 0, 1, 1], [], []>} : vector<16x8xf32>, vector<8x12xf32>, vector<16x12xf32> -> vector<16x12xf32>
    %24 = arith.addf %18, %23 : vector<16x12xf32>
    %c0_22 = arith.constant 0 : index
    %c8 = arith.constant 8 : index
    %c0_23 = arith.constant 0 : index
    %25 = vector.load %arg2[%c0_22, %c8, %c0_23] : memref<1x28x8xf32, #tpu.memory_space<vmem>>, vector<1x16x8xf32>
    %26 = vector.shape_cast %25 : vector<1x16x8xf32> to vector<16x8xf32>
    %c4_24 = arith.constant 4 : index
    %c0_25 = arith.constant 0 : index
    %c0_26 = arith.constant 0 : index
    %27 = vector.load %arg3[%c4_24, %c0_25, %c0_26] : memref<7x8x12xf32, #tpu.memory_space<vmem>>, vector<1x8x12xf32>
    %28 = vector.shape_cast %27 : vector<1x8x12xf32> to vector<8x12xf32>
    %cst_27 = arith.constant dense<0.000000e+00> : vector<16x12xf32>
    %29 = tpu.matmul %26, %28, %cst_27 {dimension_numbers = #tpu.dot_dimension_numbers<[1], [0], [0], [1], [0, 0, 1, 1], [], []>} : vector<16x8xf32>, vector<8x12xf32>, vector<16x12xf32> -> vector<16x12xf32>
    %30 = arith.addf %24, %29 : vector<16x12xf32>
    %c0_28 = arith.constant 0 : index
    %c10 = arith.constant 10 : index
    %c0_29 = arith.constant 0 : index
    %31 = vector.load %arg2[%c0_28, %c10, %c0_29] : memref<1x28x8xf32, #tpu.memory_space<vmem>>, vector<1x16x8xf32>
    %32 = vector.shape_cast %31 : vector<1x16x8xf32> to vector<16x8xf32>
    %c5 = arith.constant 5 : index
    %c0_30 = arith.constant 0 : index
    %c0_31 = arith.constant 0 : index
    %33 = vector.load %arg3[%c5, %c0_30, %c0_31] : memref<7x8x12xf32, #tpu.memory_space<vmem>>, vector<1x8x12xf32>
    %34 = vector.shape_cast %33 : vector<1x8x12xf32> to vector<8x12xf32>
    %cst_32 = arith.constant dense<0.000000e+00> : vector<16x12xf32>
    %35 = tpu.matmul %32, %34, %cst_32 {dimension_numbers = #tpu.dot_dimension_numbers<[1], [0], [0], [1], [0, 0, 1, 1], [], []>} : vector<16x8xf32>, vector<8x12xf32>, vector<16x12xf32> -> vector<16x12xf32>
    %36 = arith.addf %30, %35 : vector<16x12xf32>
    %c0_33 = arith.constant 0 : index
    %c12 = arith.constant 12 : index
    %c0_34 = arith.constant 0 : index
    %37 = vector.load %arg2[%c0_33, %c12, %c0_34] : memref<1x28x8xf32, #tpu.memory_space<vmem>>, vector<1x16x8xf32>
    %38 = vector.shape_cast %37 : vector<1x16x8xf32> to vector<16x8xf32>
    %c6_35 = arith.constant 6 : index
    %c0_36 = arith.constant 0 : index
    %c0_37 = arith.constant 0 : index
    %39 = vector.load %arg3[%c6_35, %c0_36, %c0_37] : memref<7x8x12xf32, #tpu.memory_space<vmem>>, vector<1x8x12xf32>
    %40 = vector.shape_cast %39 : vector<1x8x12xf32> to vector<8x12xf32>
    %cst_38 = arith.constant dense<0.000000e+00> : vector<16x12xf32>
    %41 = tpu.matmul %38, %40, %cst_38 {dimension_numbers = #tpu.dot_dimension_numbers<[1], [0], [0], [1], [0, 0, 1, 1], [], []>} : vector<16x8xf32>, vector<8x12xf32>, vector<16x12xf32> -> vector<16x12xf32>
    %42 = arith.addf %36, %41 : vector<16x12xf32>
    %c0_39 = arith.constant 0 : index
    %c0_40 = arith.constant 0 : index
    %43 = vector.load %arg4[%c0_39, %c0_40] : memref<1x12xf32, #tpu.memory_space<vmem>>, vector<1x12xf32>
    %44 = vector.broadcast %43 : vector<1x12xf32> to vector<16x12xf32>
    %45 = arith.addf %42, %44 : vector<16x12xf32>
    %cst_41 = arith.constant 0.000000e+00 : f32
    %46 = vector.broadcast %cst_41 : f32 to vector<16x12xf32>
    %47 = arith.maximumf %45, %46 : vector<16x12xf32>
    %48 = vector.shape_cast %47 : vector<16x12xf32> to vector<1x16x12xf32>
    %c0_42 = arith.constant 0 : index
    %c0_43 = arith.constant 0 : index
    %c0_44 = arith.constant 0 : index
    %49 = vector.load %arg5[%c0_42, %c0_43, %c0_44] : memref<1x16x12xf32, #tpu.memory_space<vmem>>, vector<1x16x12xf32>
    tpu.vector_store %arg5[%c0_42, %c0_43, %c0_44], %48 {strides = array<i32>} : memref<1x16x12xf32, #tpu.memory_space<vmem>>, vector<1x16x12xf32>,
    return
  }
  func.func @transform_0(%arg0: i32, %arg1: i32) -> (i32, i32, i32) {
    %c0_i32 = arith.constant 0 : i32
    %c0_i32_0 = arith.constant 0 : i32
    %c0_i32_1 = arith.constant 0 : i32
    return %arg0, %c0_i32, %c0_i32_0 : i32, i32, i32
  }
  func.func @transform_1(%arg0: i32, %arg1: i32) -> (i32, i32, i32) {
    %c0_i32 = arith.constant 0 : i32
    %c0_i32_0 = arith.constant 0 : i32
    %c0_i32_1 = arith.constant 0 : i32
    %c0_i32_2 = arith.constant 0 : i32
    return %c0_i32, %c0_i32_0, %c0_i32_1 : i32, i32, i32
  }
  func.func @transform_2(%arg0: i32, %arg1: i32) -> (i32, i32) {
    %c0_i32 = arith.constant 0 : i32
    %c0_i32_0 = arith.constant 0 : i32
    %c0_i32_1 = arith.constant 0 : i32
    return %c0_i32, %c0_i32_0 : i32, i32
  }
  func.func @transform_3(%arg0: i32, %arg1: i32) -> (i32, i32, i32) {
    %c0_i32 = arith.constant 0 : i32
    %c0_i32_0 = arith.constant 0 : i32
    return %arg0, %arg1, %c0_i32 : i32, i32, i32
  }
}

</mosaic_0001>

<llo_original>
// kernel: tpu_custom_call.1
$region0: #{tpu_custom_call.1}
  #allocation0 [shape = 'u32[]', space=smem, size = 0x4, offset = 0x4, fixed_abs, tag = 'smem constant byte address 0x4 - core index']
  #allocation1 [shape = 'u32[144,128]{1,0:T(1,128)}', space=vmem, size = 0x12000, scoped, tag = 'internal scratch']
  %s0 = inlined_call_operand.vmem [shape: f32[2,28,8], index: 0, kind: input, shape index: {}]
  %s1 = inlined_call_operand.vmem [shape: f32[7,8,12], index: 1, kind: input, shape index: {}]
  %s2 = inlined_call_operand.vmem [shape: f32[1,12], index: 2, kind: input, shape index: {}]
  %s3 = inlined_call_operand.vmem [shape: f32[2,16,12], index: 3, kind: output, shape index: {}]
  %s4 = sld [smem:[#allocation0]]
  $region45: #{tpu_custom_call.1} parent=0
    _
  %s6 = ssub.s32 1, %s4
  %s7 = scalar_select 0, %s6, %s4
  loop: start=0, step=1, limit=4
  $region2: #{tpu_custom_call.1} parent=0 // loop_pre_header
    _
  $region3: #{tpu_custom_call.1} parent=0 // loop_header
    %s9 = sphi 0, %s13
    %p10 = scmp.ge.s32.totalorder %s9, 4
    %s16 = sphi 0, %s28
    %s17 = sphi 0, %s24
    %s18 = sphi 0, %s16
    %s19 = sphi 0, %s17
    %s20 = sphi 0, %s18
    %s21 = sphi 0, %s19
    %s31 = sphi 0, %s33
    %s34 = sphi 0, %s31
    %s35 = sphi 0, %s34
    %s51 = sphi 0, %s35
    %s55 = sphi 0, %s55
    %s57 = sphi 0, %s55
    %s58 = sphi 0, %s57
    %s72 = sphi 0, %s58
    %s76 = sphi 0, %s76
    %s78 = sphi 0, %s76
    %s79 = sphi 0, %s78
    %s93 = sphi 0, %s79
    %s101 = sphi 0, %s103
    %s104 = sphi 0, %s101
    %s105 = sphi 0, %s104
    %s121 = sphi 0, %s105
  $region4: #{tpu_custom_call.1} parent=0 // loop_header_branch
    %12 = sbr.rel (%p10) target = $region8
  $region5: #{tpu_custom_call.1} parent=0 // loop_body
    %s14 = ssub.s32 %s9, 1
    %s15 = ssub.s32 %s9, 2
    %s22 = sadd.s32 1, %s17
    %p23 = scmp.ge.s32.totalorder %s22, 1
    %s24 = scalar_select %p23, 0, %s22
    %s25 = sadd.s32 1, %s16
    %s26 = scalar_select %p23, %s25, %s16
    %p27 = scmp.ge.s32.totalorder %s26, 2
    %s28 = scalar_select %p27, 0, %s26
    %s29 = ssub.s32 %s16, %s28
    %p30 = scmp.eq.s32.totalorder %s29, 0
    %s32 = sadd.s32 %s31, 1
    %s33 = scalar_select %p30, %s31, %s32
    %p36 = pneg %p30
    %p37 = scmp.eq.s32.totalorder %s9, 1
    %p38 = por %p36, %p37
    %p39 = scmp.ne.s32.totalorder %s31, %s34
    %p40 = scmp.eq.s32.totalorder %s9, 0
    %p41 = por %p39, %p40
    %p42 = scmp.ne.s32.totalorder %s31, %s34
    %p43 = scmp.eq.s32.totalorder %s14, 1
    %p44 = por %p42, %p43
    %p45 = scmp.ne.s32.totalorder %s34, %s35
    %p46 = scmp.eq.s32.totalorder %s14, 0
    %p47 = por %p45, %p46
    %p48 = scmp.ne.s32.totalorder %s34, %s35
    %p49 = scmp.eq.s32.totalorder %s15, 1
    %p50 = por %p48, %p49
    %p52 = scmp.ne.s32.totalorder %s35, %s51
    %p53 = scmp.eq.s32.totalorder %s15, 0
    %p54 = por %p52, %p53
    %s56 = sadd.s32 %s55, 1
    %p59 = scmp.eq.s32.totalorder %s9, 1
    %p60 = scmp.ne.s32.totalorder %s55, %s57
    %p61 = scmp.eq.s32.totalorder %s9, 0
    %p62 = por %p60, %p61
    %p63 = scmp.ne.s32.totalorder %s55, %s57
    %p64 = scmp.eq.s32.totalorder %s14, 1
    %p65 = por %p63, %p64
    %p66 = scmp.ne.s32.totalorder %s57, %s58
    %p67 = scmp.eq.s32.totalorder %s14, 0
    %p68 = por %p66, %p67
    %p69 = scmp.ne.s32.totalorder %s57, %s58
    %p70 = scmp.eq.s32.totalorder %s15, 1
    %p71 = por %p69, %p70
    %p73 = scmp.ne.s32.totalorder %s58, %s72
    %p74 = scmp.eq.s32.totalorder %s15, 0
    %p75 = por %p73, %p74
    %s77 = sadd.s32 %s76, 1
    %p80 = scmp.eq.s32.totalorder %s9, 1
    %p81 = scmp.ne.s32.totalorder %s76, %s78
    %p82 = scmp.eq.s32.totalorder %s9, 0
    %p83 = por %p81, %p82
    %p84 = scmp.ne.s32.totalorder %s76, %s78
    %p85 = scmp.eq.s32.totalorder %s14, 1
    %p86 = por %p84, %p85
    %p87 = scmp.ne.s32.totalorder %s78, %s79
    %p88 = scmp.eq.s32.totalorder %s14, 0
    %p89 = por %p87, %p88
    %p90 = scmp.ne.s32.totalorder %s78, %s79
    %p91 = scmp.eq.s32.totalorder %s15, 1
    %p92 = por %p90, %p91
    %p94 = scmp.ne.s32.totalorder %s79, %s93
    %p95 = scmp.eq.s32.totalorder %s15, 0
    %p96 = por %p94, %p95
    %s97 = ssub.s32 %s16, %s28
    %s98 = ssub.s32 %s17, %s24
    %s99 = sor.u32 %s97, %s98
    %p100 = scmp.eq.s32.totalorder %s99, 0
    %s102 = sadd.s32 %s101, 1
    %s103 = scalar_select %p100, %s101, %s102
    %p106 = pneg %p100
    %p107 = scmp.eq.s32.totalorder %s9, 1
    %p108 = por %p106, %p107
    %p109 = scmp.ne.s32.totalorder %s101, %s104
    %p110 = scmp.eq.s32.totalorder %s9, 0
    %p111 = por %p109, %p110
    %p112 = scmp.ne.s32.totalorder %s101, %s104
    %p113 = scmp.eq.s32.totalorder %s14, 1
    %p114 = por %p112, %p113
    %p115 = scmp.ne.s32.totalorder %s104, %s105
    %p116 = scmp.eq.s32.totalorder %s14, 0
    %p117 = por %p115, %p116
    %p118 = scmp.ne.s32.totalorder %s104, %s105
    %p119 = scmp.eq.s32.totalorder %s15, 1
    %p120 = por %p118, %p119
    %p122 = scmp.ne.s32.totalorder %s105, %s121
    %p123 = scmp.eq.s32.totalorder %s15, 0
    %p124 = por %p122, %p123
    %p125 = scmp.le.s32.totalorder 1, %s9
    %p126 = scmp.lt.s32.totalorder %s9, 3
    %p127 = pnand %p125, %p126
    %p128 = pneg %p127
    // Predicated region
    $region9: #{tpu_custom_call.1} parent=5 // pred_check
      _
    $region10: #{tpu_custom_call.1} parent=5 // pred_check_branch
      %130 = sbr.rel (%p127) target = $region12
    $region11: #{tpu_custom_call.1} parent=5 // pred_region
      %s131 = ssub.s32 %s9, 1
      // Predicated region
      $region13: #{tpu_custom_call.1} parent=11 // pred_check
        %p132 = pneg %p68
      $region14: #{tpu_custom_call.1} parent=11 // pred_check_branch
        %134 = sbr.rel (%p132) target = $region16
      $region15: #{tpu_custom_call.1} parent=11 // pred_region
        _
      $region16: #{tpu_custom_call.1} parent=11 // pred_fallthru
        _
      // Predicated region
      $region17: #{tpu_custom_call.1} parent=11 // pred_check
        %p135 = pneg %p89
      $region18: #{tpu_custom_call.1} parent=11 // pred_check_branch
        %137 = sbr.rel (%p135) target = $region20
      $region19: #{tpu_custom_call.1} parent=11 // pred_region
        _
      $region20: #{tpu_custom_call.1} parent=11 // pred_fallthru
        _
    $region12: #{tpu_custom_call.1} parent=5 // pred_fallthru
      _
    %p138 = scmp.lt.s32.totalorder %s9, 2
    // Predicated region
    $region21: #{tpu_custom_call.1} parent=5 // pred_check
      %p139 = pneg %p138
    $region22: #{tpu_custom_call.1} parent=5 // pred_check_branch
      %141 = sbr.rel (%p139) target = $region24
    $region23: #{tpu_custom_call.1} parent=5 // pred_region
      // Predicated region
      $region25: #{tpu_custom_call.1} parent=23 // pred_check
        %p142 = pneg %p41
      $region26: #{tpu_custom_call.1} parent=23 // pred_check_branch
        %144 = sbr.rel (%p142) target = $region28
      $region27: #{tpu_custom_call.1} parent=23 // pred_region
        %p145 = scmp.lt.s32.totalorder %s16, 1
        %s146 = scalar_select %p145, %s16, 1
        %s147 = smul.addr %s146, 4
        %s148 = smul.addr %s147, 8
        %s149 = scalar_lea.vmem %s0, %s148
      $region28: #{tpu_custom_call.1} parent=23 // pred_fallthru
        _
    $region24: #{tpu_custom_call.1} parent=5 // pred_fallthru
      _
    %p150 = scmp.le.s32.totalorder 1, %s9
    %p151 = scmp.lt.s32.totalorder %s9, 3
    %p152 = pnand %p150, %p151
    %p153 = pneg %p152
    // Predicated region
    $region29: #{tpu_custom_call.1} parent=5 // pred_check
      _
    $region30: #{tpu_custom_call.1} parent=5 // pred_check_branch
      %155 = sbr.rel (%p152) target = $region32
    $region31: #{tpu_custom_call.1} parent=5 // pred_region
      %s156 = ssub.s32 %s9, 1
      %p157 = scmp.lt.s32.totalorder %s18, 1
      %s158 = scalar_select %p157, %s18, 1
      %s159 = smul.addr %s158, 4
      %s160 = smul.addr %s159, 8
      %s161 = scalar_lea.vmem %s0, %s160
      %p162 = pneg %p47
      %p163 = pneg %p44
      %p164 = pneg %p68
      %p165 = pneg %p65
      %p166 = pneg %p89
      %p167 = pneg %p86
      %p168 = pneg %p117
      %p169 = pneg %p114
      %s170 = smul.u32 2, %s19
      %p171 = scmp.lt.s32.totalorder %s18, 1
      %s172 = scalar_select %p171, %s18, 1
      %p173 = scmp.lt.s32.totalorder %s170, 1
      %s174 = scalar_select %p173, %s170, 1
      %s175 = smul.addr %s172, 2
      %s176 = sadd.s32 %s174, %s175
      %s177 = smul.addr %s176, 8
      %s178 = scalar_lea.vmem %s3, %s177
      %p179 = scmp.lt.s32.totalorder %s18, 1
      %s180 = scalar_select %p179, %s18, 1
      %s181 = smul.addr %s180, 4
      %s182 = smul.addr %s181, 8
      %s183 = scalar_lea.vmem %s0, %s182
      %s184 = smul.u32 2, %s19
      %p185 = scmp.lt.s32.totalorder %s18, 1
      %s186 = scalar_select %p185, %s18, 1
      %p187 = scmp.lt.s32.totalorder %s184, 1
      %s188 = scalar_select %p187, %s184, 1
      %s189 = smul.addr %s186, 2
      %s190 = sadd.s32 %s188, %s189
      %s191 = smul.addr %s190, 8
      %s192 = scalar_lea.vmem %s3, %s191
      %s193 = smul.u32 2, %s19
      %v194 = vld [vmem:[%s183] sm:$0xff]
      %v195 = vld [vmem:[%s183 + $0x8] sm:$0xff]
      %v196 = vld [vmem:[%s1] sm:$0xff]
      %v197 = vld [vmem:[%s183 + $0x2] sm:$0xff]
      %v198 = vld [vmem:[%s183 + $0xa] sm:$0xff]
      %s199 = scalar_lea.vmem %s1, 8
      %v200 = vld [vmem:[%s199] sm:$0xff]
      %vm201 = vcmask 64512
      %v203 = vsel %vm201, %v197, 0
      %v206 = vsel %vm201, %v198, 0
      %208 = vmatprep.subr.mxu0 0.0
      %209 = vmatpush1.msra.mxu0 %v200
      %210 = vmatprep.subr.mxu0 0.0
      %211 = vmatpush1.msra.mxu0 0.0
      %212 = vmatprep.subr.mxu0 0.0
      %213 = vmatpush1.msra.mxu0 0.0
      %214 = vmatprep.subr.mxu0 0.0
      %215 = vmatpush1.msra.mxu0 0.0
      %216 = vmatprep.subr.mxu0 0.0
      %217 = vmatpush1.msra.mxu0 0.0
      %218 = vmatprep.subr.mxu0 0.0
      %219 = vmatpush1.msra.mxu0 0.0
      %220 = vmatprep.subr.mxu0 0.0
      %221 = vmatpush1.msra.mxu0 0.0
      %222 = vmatprep.subr.mxu0 0.0
      %223 = vmatpush1.msra.mxu0 0.0
      %224 = vmatprep.subr.mxu0 0.0
      %225 = vmatpush1.msra.mxu0 0.0
      %226 = vmatprep.subr.mxu0 0.0
      %227 = vmatpush1.msra.mxu0 0.0
      %228 = vmatprep.subr.mxu0 0.0
      %229 = vmatpush1.msra.mxu0 0.0
      %230 = vmatprep.subr.mxu0 0.0
      %231 = vmatpush1.msra.mxu0 0.0
      %232 = vmatprep.subr.mxu0 0.0
      %233 = vmatpush1.msra.mxu0 0.0
      %234 = vmatprep.subr.mxu0 0.0
      %235 = vmatpush1.msra.mxu0 0.0
      %236 = vmatprep.subr.mxu0 0.0
      %237 = vmatpush1.msra.mxu0 0.0
      %238 = vmatprep.subr.mxu0 0.0
      %239 = vmatpush1.msra.mxu0 0.0
      %240 = vmatprep.subr.mxu0 0.0
      %241 = vmatpush1.msra.mxu0 0.0
      %242 = vmatprep.subr.mxu0 0.0
      %243 = vmatpush1.msra.mxu0 0.0
      %244 = vmatprep.subr.mxu0 0.0
      %245 = vmatpush1.msra.mxu0 0.0
      %246 = vmatprep.subr.mxu0 0.0
      %247 = vmatpush1.msra.mxu0 0.0
      %248 = vmatprep.subr.mxu0 0.0
      %249 = vmatpush1.msra.mxu0 0.0
      %250 = vmatprep.subr.mxu0 0.0
      %251 = vmatpush1.msra.mxu0 0.0
      %252 = vmatprep.subr.mxu0 0.0
      %253 = vmatpush1.msra.mxu0 0.0
      %254 = vmatprep.subr.mxu0 0.0
      %255 = vmatpush1.msra.mxu0 0.0
      %256 = vmatprep.subr.mxu0 0.0
      %257 = vmatpush1.msra.mxu0 0.0
      %258 = vmatprep.subr.mxu0 0.0
      %259 = vmatpush1.msra.mxu0 0.0
      %260 = vmatprep.subr.mxu0 0.0
      %261 = vmatpush1.msra.mxu0 0.0
      %262 = vmatprep.subr.mxu0 0.0
      %263 = vmatpush1.msra.mxu0 0.0
      %264 = vmatprep.subr.mxu0 0.0
      %265 = vmatpush1.msra.mxu0 0.0
      %266 = vmatprep.subr.mxu0 0.0
      %267 = vmatpush1.msra.mxu0 0.0
      %268 = vmatprep.subr.mxu0 0.0
      %269 = vmatpush1.msra.mxu0 0.0
      %270 = vmatprep.subr.mxu0 0.0
      %271 = vmatpush1.msra.mxu0 0.0
      %272 = vmatprep.mubr.f32.mxu0 0.0
      %273 = vmatmul.mubr.f32.gmra.mrb[0].mxu0 %v203
      %v274 = vpop.f32.mrb[0].mxu0
      %v275 = vadd.f32 0.0, %v274
      %v276 = vpop.f32.mrb[0].mxu0
      %277 = vmatprep.mubr.f32.mxu0 0.0
      %278 = vmatmul.mubr.f32.gmra.mrb[0].mxu0 %v206
      %v279 = vpop.f32.mrb[0].mxu0
      %v280 = vadd.f32 0.0, %v279
      %v281 = vpop.f32.mrb[0].mxu0
      %282 = vdwg.mxu0
      %v284 = vsel %vm201, %v194, 0
      %v287 = vsel %vm201, %v195, 0
      %289 = vmatprep.subr.mxu0 0.0
      %290 = vmatpush1.msra.mxu0 %v196
      %291 = vmatprep.subr.mxu0 0.0
      %292 = vmatpush1.msra.mxu0 0.0
      %293 = vmatprep.subr.mxu0 0.0
      %294 = vmatpush1.msra.mxu0 0.0
      %295 = vmatprep.subr.mxu0 0.0
      %296 = vmatpush1.msra.mxu0 0.0
      %297 = vmatprep.subr.mxu0 0.0
      %298 = vmatpush1.msra.mxu0 0.0
      %299 = vmatprep.subr.mxu0 0.0
      %300 = vmatpush1.msra.mxu0 0.0
      %301 = vmatprep.subr.mxu0 0.0
      %302 = vmatpush1.msra.mxu0 0.0
      %303 = vmatprep.subr.mxu0 0.0
      %304 = vmatpush1.msra.mxu0 0.0
      %305 = vmatprep.subr.mxu0 0.0
      %306 = vmatpush1.msra.mxu0 0.0
      %307 = vmatprep.subr.mxu0 0.0
      %308 = vmatpush1.msra.mxu0 0.0
      %309 = vmatprep.subr.mxu0 0.0
      %310 = vmatpush1.msra.mxu0 0.0
      %311 = vmatprep.subr.mxu0 0.0
      %312 = vmatpush1.msra.mxu0 0.0
      %313 = vmatprep.subr.mxu0 0.0
      %314 = vmatpush1.msra.mxu0 0.0
      %315 = vmatprep.subr.mxu0 0.0
      %316 = vmatpush1.msra.mxu0 0.0
      %317 = vmatprep.subr.mxu0 0.0
      %318 = vmatpush1.msra.mxu0 0.0
      %319 = vmatprep.subr.mxu0 0.0
      %320 = vmatpush1.msra.mxu0 0.0
      %321 = vmatprep.subr.mxu0 0.0
      %322 = vmatpush1.msra.mxu0 0.0
      %323 = vmatprep.subr.mxu0 0.0
      %324 = vmatpush1.msra.mxu0 0.0
      %325 = vmatprep.subr.mxu0 0.0
      %326 = vmatpush1.msra.mxu0 0.0
      %327 = vmatprep.subr.mxu0 0.0
      %328 = vmatpush1.msra.mxu0 0.0
      %329 = vmatprep.subr.mxu0 0.0
      %330 = vmatpush1.msra.mxu0 0.0
      %331 = vmatprep.subr.mxu0 0.0
      %332 = vmatpush1.msra.mxu0 0.0
      %333 = vmatprep.subr.mxu0 0.0
      %334 = vmatpush1.msra.mxu0 0.0
      %335 = vmatprep.subr.mxu0 0.0
      %336 = vmatpush1.msra.mxu0 0.0
      %337 = vmatprep.subr.mxu0 0.0
      %338 = vmatpush1.msra.mxu0 0.0
      %339 = vmatprep.subr.mxu0 0.0
      %340 = vmatpush1.msra.mxu0 0.0
      %341 = vmatprep.subr.mxu0 0.0
      %342 = vmatpush1.msra.mxu0 0.0
      %343 = vmatprep.subr.mxu0 0.0
      %344 = vmatpush1.msra.mxu0 0.0
      %345 = vmatprep.subr.mxu0 0.0
      %346 = vmatpush1.msra.mxu0 0.0
      %347 = vmatprep.subr.mxu0 0.0
      %348 = vmatpush1.msra.mxu0 0.0
      %349 = vmatprep.subr.mxu0 0.0
      %350 = vmatpush1.msra.mxu0 0.0
      %351 = vmatprep.subr.mxu0 0.0
      %352 = vmatpush1.msra.mxu0 0.0
      %353 = vmatprep.mubr.f32.mxu0 0.0
      %354 = vmatmul.mubr.f32.gmra.mrb[0].mxu0 %v284
      %v355 = vpop.f32.mrb[0].mxu0
      %v356 = vadd.f32 %v275, %v355
      %v357 = vpop.f32.mrb[0].mxu0
      %358 = vmatprep.mubr.f32.mxu0 0.0
      %359 = vmatmul.mubr.f32.gmra.mrb[0].mxu0 %v287
      %v360 = vpop.f32.mrb[0].mxu0
      %v361 = vadd.f32 %v280, %v360
      %v362 = vpop.f32.mrb[0].mxu0
      %363 = vdwg.mxu0
      %v364 = vld [vmem:[%s183 + $0x4] sm:$0xff]
      %v365 = vld [vmem:[%s183 + $0xc] sm:$0xff]
      %s366 = scalar_lea.vmem %s1, 16
      %v367 = vld [vmem:[%s366] sm:$0xff]
      %v369 = vsel %vm201, %v364, 0
      %v372 = vsel %vm201, %v365, 0
      %374 = vmatprep.subr.mxu0 0.0
      %375 = vmatpush1.msra.mxu0 %v367
      %376 = vmatprep.subr.mxu0 0.0
      %377 = vmatpush1.msra.mxu0 0.0
      %378 = vmatprep.subr.mxu0 0.0
      %379 = vmatpush1.msra.mxu0 0.0
      %380 = vmatprep.subr.mxu0 0.0
      %381 = vmatpush1.msra.mxu0 0.0
      %382 = vmatprep.subr.mxu0 0.0
      %383 = vmatpush1.msra.mxu0 0.0
      %384 = vmatprep.subr.mxu0 0.0
      %385 = vmatpush1.msra.mxu0 0.0
      %386 = vmatprep.subr.mxu0 0.0
      %387 = vmatpush1.msra.mxu0 0.0
      %388 = vmatprep.subr.mxu0 0.0
      %389 = vmatpush1.msra.mxu0 0.0
      %390 = vmatprep.subr.mxu0 0.0
      %391 = vmatpush1.msra.mxu0 0.0
      %392 = vmatprep.subr.mxu0 0.0
      %393 = vmatpush1.msra.mxu0 0.0
      %394 = vmatprep.subr.mxu0 0.0
      %395 = vmatpush1.msra.mxu0 0.0
      %396 = vmatprep.subr.mxu0 0.0
      %397 = vmatpush1.msra.mxu0 0.0
      %398 = vmatprep.subr.mxu0 0.0
      %399 = vmatpush1.msra.mxu0 0.0
      %400 = vmatprep.subr.mxu0 0.0
      %401 = vmatpush1.msra.mxu0 0.0
      %402 = vmatprep.subr.mxu0 0.0
      %403 = vmatpush1.msra.mxu0 0.0
      %404 = vmatprep.subr.mxu0 0.0
      %405 = vmatpush1.msra.mxu0 0.0
      %406 = vmatprep.subr.mxu0 0.0
      %407 = vmatpush1.msra.mxu0 0.0
      %408 = vmatprep.subr.mxu0 0.0
      %409 = vmatpush1.msra.mxu0 0.0
      %410 = vmatprep.subr.mxu0 0.0
      %411 = vmatpush1.msra.mxu0 0.0
      %412 = vmatprep.subr.mxu0 0.0
      %413 = vmatpush1.msra.mxu0 0.0
      %414 = vmatprep.subr.mxu0 0.0
      %415 = vmatpush1.msra.mxu0 0.0
      %416 = vmatprep.subr.mxu0 0.0
      %417 = vmatpush1.msra.mxu0 0.0
      %418 = vmatprep.subr.mxu0 0.0
      %419 = vmatpush1.msra.mxu0 0.0
      %420 = vmatprep.subr.mxu0 0.0
      %421 = vmatpush1.msra.mxu0 0.0
      %422 = vmatprep.subr.mxu0 0.0
      %423 = vmatpush1.msra.mxu0 0.0
      %424 = vmatprep.subr.mxu0 0.0
      %425 = vmatpush1.msra.mxu0 0.0
      %426 = vmatprep.subr.mxu0 0.0
      %427 = vmatpush1.msra.mxu0 0.0
      %428 = vmatprep.subr.mxu0 0.0
      %429 = vmatpush1.msra.mxu0 0.0
      %430 = vmatprep.subr.mxu0 0.0
      %431 = vmatpush1.msra.mxu0 0.0
      %432 = vmatprep.subr.mxu0 0.0
      %433 = vmatpush1.msra.mxu0 0.0
      %434 = vmatprep.subr.mxu0 0.0
      %435 = vmatpush1.msra.mxu0 0.0
      %436 = vmatprep.subr.mxu0 0.0
      %437 = vmatpush1.msra.mxu0 0.0
      %438 = vmatprep.mubr.f32.mxu0 0.0
      %439 = vmatmul.mubr.f32.gmra.mrb[0].mxu0 %v369
      %v440 = vpop.f32.mrb[0].mxu0
      %v441 = vadd.f32 0.0, %v440
      %v442 = vpop.f32.mrb[0].mxu0
      %443 = vmatprep.mubr.f32.mxu0 0.0
      %444 = vmatmul.mubr.f32.gmra.mrb[0].mxu0 %v372
      %v445 = vpop.f32.mrb[0].mxu0
      %v446 = vadd.f32 0.0, %v445
      %v447 = vpop.f32.mrb[0].mxu0
      %448 = vdwg.mxu0
      %v449 = vadd.f32 %v356, %v441
      %v450 = vadd.f32 %v361, %v446
      %v451 = vld [vmem:[%s183 + $0x6] sm:$0xff]
      %v452 = vld [vmem:[%s183 + $0xe] sm:$0xff]
      %s453 = scalar_lea.vmem %s1, 24
      %v454 = vld [vmem:[%s453] sm:$0xff]
      %v456 = vsel %vm201, %v451, 0
      %v459 = vsel %vm201, %v452, 0
      %461 = vmatprep.subr.mxu0 0.0
      %462 = vmatpush1.msra.mxu0 %v454
      %463 = vmatprep.subr.mxu0 0.0
      %464 = vmatpush1.msra.mxu0 0.0
      %465 = vmatprep.subr.mxu0 0.0
      %466 = vmatpush1.msra.mxu0 0.0
      %467 = vmatprep.subr.mxu0 0.0
      %468 = vmatpush1.msra.mxu0 0.0
      %469 = vmatprep.subr.mxu0 0.0
      %470 = vmatpush1.msra.mxu0 0.0
      %471 = vmatprep.subr.mxu0 0.0
      %472 = vmatpush1.msra.mxu0 0.0
      %473 = vmatprep.subr.mxu0 0.0
      %474 = vmatpush1.msra.mxu0 0.0
      %475 = vmatprep.subr.mxu0 0.0
      %476 = vmatpush1.msra.mxu0 0.0
      %477 = vmatprep.subr.mxu0 0.0
      %478 = vmatpush1.msra.mxu0 0.0
      %479 = vmatprep.subr.mxu0 0.0
      %480 = vmatpush1.msra.mxu0 0.0
      %481 = vmatprep.subr.mxu0 0.0
      %482 = vmatpush1.msra.mxu0 0.0
      %483 = vmatprep.subr.mxu0 0.0
      %484 = vmatpush1.msra.mxu0 0.0
      %485 = vmatprep.subr.mxu0 0.0
      %486 = vmatpush1.msra.mxu0 0.0
      %487 = vmatprep.subr.mxu0 0.0
      %488 = vmatpush1.msra.mxu0 0.0
      %489 = vmatprep.subr.mxu0 0.0
      %490 = vmatpush1.msra.mxu0 0.0
      %491 = vmatprep.subr.mxu0 0.0
      %492 = vmatpush1.msra.mxu0 0.0
      %493 = vmatprep.subr.mxu0 0.0
      %494 = vmatpush1.msra.mxu0 0.0
      %495 = vmatprep.subr.mxu0 0.0
      %496 = vmatpush1.msra.mxu0 0.0
      %497 = vmatprep.subr.mxu0 0.0
      %498 = vmatpush1.msra.mxu0 0.0
      %499 = vmatprep.subr.mxu0 0.0
      %500 = vmatpush1.msra.mxu0 0.0
      %501 = vmatprep.subr.mxu0 0.0
      %502 = vmatpush1.msra.mxu0 0.0
      %503 = vmatprep.subr.mxu0 0.0
      %504 = vmatpush1.msra.mxu0 0.0
      %505 = vmatprep.subr.mxu0 0.0
      %506 = vmatpush1.msra.mxu0 0.0
      %507 = vmatprep.subr.mxu0 0.0
      %508 = vmatpush1.msra.mxu0 0.0
      %509 = vmatprep.subr.mxu0 0.0
      %510 = vmatpush1.msra.mxu0 0.0
      %511 = vmatprep.subr.mxu0 0.0
      %512 = vmatpush1.msra.mxu0 0.0
      %513 = vmatprep.subr.mxu0 0.0
      %514 = vmatpush1.msra.mxu0 0.0
      %515 = vmatprep.subr.mxu0 0.0
      %516 = vmatpush1.msra.mxu0 0.0
      %517 = vmatprep.subr.mxu0 0.0
      %518 = vmatpush1.msra.mxu0 0.0
      %519 = vmatprep.subr.mxu0 0.0
      %520 = vmatpush1.msra.mxu0 0.0
      %521 = vmatprep.subr.mxu0 0.0
      %522 = vmatpush1.msra.mxu0 0.0
      %523 = vmatprep.subr.mxu0 0.0
      %524 = vmatpush1.msra.mxu0 0.0
      %525 = vmatprep.mubr.f32.mxu0 0.0
      %526 = vmatmul.mubr.f32.gmra.mrb[0].mxu0 %v456
      %v527 = vpop.f32.mrb[0].mxu0
      %v528 = vadd.f32 0.0, %v527
      %v529 = vpop.f32.mrb[0].mxu0
      %530 = vmatprep.mubr.f32.mxu0 0.0
      %531 = vmatmul.mubr.f32.gmra.mrb[0].mxu0 %v459
      %v532 = vpop.f32.mrb[0].mxu0
      %v533 = vadd.f32 0.0, %v532
      %v534 = vpop.f32.mrb[0].mxu0
      %535 = vdwg.mxu0
      %v536 = vadd.f32 %v449, %v528
      %v537 = vadd.f32 %v450, %v533
      %v538 = vld [vmem:[%s183 + $0x8] sm:$0xff]
      %v539 = vld [vmem:[%s183 + $0x10] sm:$0xff]
      %s540 = scalar_lea.vmem %s1, 32
      %v541 = vld [vmem:[%s540] sm:$0xff]
      %v543 = vsel %vm201, %v538, 0
      %v546 = vsel %vm201, %v539, 0
      %548 = vmatprep.subr.mxu0 0.0
      %549 = vmatpush1.msra.mxu0 %v541
      %550 = vmatprep.subr.mxu0 0.0
      %551 = vmatpush1.msra.mxu0 0.0
      %552 = vmatprep.subr.mxu0 0.0
      %553 = vmatpush1.msra.mxu0 0.0
      %554 = vmatprep.subr.mxu0 0.0
      %555 = vmatpush1.msra.mxu0 0.0
      %556 = vmatprep.subr.mxu0 0.0
      %557 = vmatpush1.msra.mxu0 0.0
      %558 = vmatprep.subr.mxu0 0.0
      %559 = vmatpush1.msra.mxu0 0.0
      %560 = vmatprep.subr.mxu0 0.0
      %561 = vmatpush1.msra.mxu0 0.0
      %562 = vmatprep.subr.mxu0 0.0
      %563 = vmatpush1.msra.mxu0 0.0
      %564 = vmatprep.subr.mxu0 0.0
      %565 = vmatpush1.msra.mxu0 0.0
      %566 = vmatprep.subr.mxu0 0.0
      %567 = vmatpush1.msra.mxu0 0.0
      %568 = vmatprep.subr.mxu0 0.0
      %569 = vmatpush1.msra.mxu0 0.0
      %570 = vmatprep.subr.mxu0 0.0
      %571 = vmatpush1.msra.mxu0 0.0
      %572 = vmatprep.subr.mxu0 0.0
      %573 = vmatpush1.msra.mxu0 0.0
      %574 = vmatprep.subr.mxu0 0.0
      %575 = vmatpush1.msra.mxu0 0.0
      %576 = vmatprep.subr.mxu0 0.0
      %577 = vmatpush1.msra.mxu0 0.0
      %578 = vmatprep.subr.mxu0 0.0
      %579 = vmatpush1.msra.mxu0 0.0
      %580 = vmatprep.subr.mxu0 0.0
      %581 = vmatpush1.msra.mxu0 0.0
      %582 = vmatprep.subr.mxu0 0.0
      %583 = vmatpush1.msra.mxu0 0.0
      %584 = vmatprep.subr.mxu0 0.0
      %585 = vmatpush1.msra.mxu0 0.0
      %586 = vmatprep.subr.mxu0 0.0
      %587 = vmatpush1.msra.mxu0 0.0
      %588 = vmatprep.subr.mxu0 0.0
      %589 = vmatpush1.msra.mxu0 0.0
      %590 = vmatprep.subr.mxu0 0.0
      %591 = vmatpush1.msra.mxu0 0.0
      %592 = vmatprep.subr.mxu0 0.0
      %593 = vmatpush1.msra.mxu0 0.0
      %594 = vmatprep.subr.mxu0 0.0
      %595 = vmatpush1.msra.mxu0 0.0
      %596 = vmatprep.subr.mxu0 0.0
      %597 = vmatpush1.msra.mxu0 0.0
      %598 = vmatprep.subr.mxu0 0.0
      %599 = vmatpush1.msra.mxu0 0.0
      %600 = vmatprep.subr.mxu0 0.0
      %601 = vmatpush1.msra.mxu0 0.0
      %602 = vmatprep.subr.mxu0 0.0
      %603 = vmatpush1.msra.mxu0 0.0
      %604 = vmatprep.subr.mxu0 0.0
      %605 = vmatpush1.msra.mxu0 0.0
      %606 = vmatprep.subr.mxu0 0.0
      %607 = vmatpush1.msra.mxu0 0.0
      %608 = vmatprep.subr.mxu0 0.0
      %609 = vmatpush1.msra.mxu0 0.0
      %610 = vmatprep.subr.mxu0 0.0
      %611 = vmatpush1.msra.mxu0 0.0
      %612 = vmatprep.mubr.f32.mxu0 0.0
      %613 = vmatmul.mubr.f32.gmra.mrb[0].mxu0 %v543
      %v614 = vpop.f32.mrb[0].mxu0
      %v615 = vadd.f32 0.0, %v614
      %v616 = vpop.f32.mrb[0].mxu0
      %617 = vmatprep.mubr.f32.mxu0 0.0
      %618 = vmatmul.mubr.f32.gmra.mrb[0].mxu0 %v546
      %v619 = vpop.f32.mrb[0].mxu0
      %v620 = vadd.f32 0.0, %v619
      %v621 = vpop.f32.mrb[0].mxu0
      %622 = vdwg.mxu0
      %v623 = vadd.f32 %v536, %v615
      %v624 = vadd.f32 %v537, %v620
      %v625 = vld [vmem:[%s183 + $0xa] sm:$0xff]
      %v626 = vld [vmem:[%s183 + $0x12] sm:$0xff]
      %s627 = scalar_lea.vmem %s1, 40
      %v628 = vld [vmem:[%s627] sm:$0xff]
      %v630 = vsel %vm201, %v625, 0
      %v633 = vsel %vm201, %v626, 0
      %635 = vmatprep.subr.mxu0 0.0
      %636 = vmatpush1.msra.mxu0 %v628
      %637 = vmatprep.subr.mxu0 0.0
      %638 = vmatpush1.msra.mxu0 0.0
      %639 = vmatprep.subr.mxu0 0.0
      %640 = vmatpush1.msra.mxu0 0.0
      %641 = vmatprep.subr.mxu0 0.0
      %642 = vmatpush1.msra.mxu0 0.0
      %643 = vmatprep.subr.mxu0 0.0
      %644 = vmatpush1.msra.mxu0 0.0
      %645 = vmatprep.subr.mxu0 0.0
      %646 = vmatpush1.msra.mxu0 0.0
      %647 = vmatprep.subr.mxu0 0.0
      %648 = vmatpush1.msra.mxu0 0.0
      %649 = vmatprep.subr.mxu0 0.0
      %650 = vmatpush1.msra.mxu0 0.0
      %651 = vmatprep.subr.mxu0 0.0
      %652 = vmatpush1.msra.mxu0 0.0
      %653 = vmatprep.subr.mxu0 0.0
      %654 = vmatpush1.msra.mxu0 0.0
      %655 = vmatprep.subr.mxu0 0.0
      %656 = vmatpush1.msra.mxu0 0.0
      %657 = vmatprep.subr.mxu0 0.0
      %658 = vmatpush1.msra.mxu0 0.0
      %659 = vmatprep.subr.mxu0 0.0
      %660 = vmatpush1.msra.mxu0 0.0
      %661 = vmatprep.subr.mxu0 0.0
      %662 = vmatpush1.msra.mxu0 0.0
      %663 = vmatprep.subr.mxu0 0.0
      %664 = vmatpush1.msra.mxu0 0.0
      %665 = vmatprep.subr.mxu0 0.0
      %666 = vmatpush1.msra.mxu0 0.0
      %667 = vmatprep.subr.mxu0 0.0
      %668 = vmatpush1.msra.mxu0 0.0
      %669 = vmatprep.subr.mxu0 0.0
      %670 = vmatpush1.msra.mxu0 0.0
      %671 = vmatprep.subr.mxu0 0.0
      %672 = vmatpush1.msra.mxu0 0.0
      %673 = vmatprep.subr.mxu0 0.0
      %674 = vmatpush1.msra.mxu0 0.0
      %675 = vmatprep.subr.mxu0 0.0
      %676 = vmatpush1.msra.mxu0 0.0
      %677 = vmatprep.subr.mxu0 0.0
      %678 = vmatpush1.msra.mxu0 0.0
      %679 = vmatprep.subr.mxu0 0.0
      %680 = vmatpush1.msra.mxu0 0.0
      %681 = vmatprep.subr.mxu0 0.0
      %682 = vmatpush1.msra.mxu0 0.0
      %683 = vmatprep.subr.mxu0 0.0
      %684 = vmatpush1.msra.mxu0 0.0
      %685 = vmatprep.subr.mxu0 0.0
      %686 = vmatpush1.msra.mxu0 0.0
      %687 = vmatprep.subr.mxu0 0.0
      %688 = vmatpush1.msra.mxu0 0.0
      %689 = vmatprep.subr.mxu0 0.0
      %690 = vmatpush1.msra.mxu0 0.0
      %691 = vmatprep.subr.mxu0 0.0
      %692 = vmatpush1.msra.mxu0 0.0
      %693 = vmatprep.subr.mxu0 0.0
      %694 = vmatpush1.msra.mxu0 0.0
      %695 = vmatprep.subr.mxu0 0.0
      %696 = vmatpush1.msra.mxu0 0.0
      %697 = vmatprep.subr.mxu0 0.0
      %698 = vmatpush1.msra.mxu0 0.0
      %699 = vmatprep.mubr.f32.mxu0 0.0
      %700 = vmatmul.mubr.f32.gmra.mrb[0].mxu0 %v630
      %v701 = vpop.f32.mrb[0].mxu0
      %v702 = vadd.f32 0.0, %v701
      %v703 = vpop.f32.mrb[0].mxu0
      %704 = vmatprep.mubr.f32.mxu0 0.0
      %705 = vmatmul.mubr.f32.gmra.mrb[0].mxu0 %v633
      %v706 = vpop.f32.mrb[0].mxu0
      %v707 = vadd.f32 0.0, %v706
      %v708 = vpop.f32.mrb[0].mxu0
      %709 = vdwg.mxu0
      %v710 = vadd.f32 %v623, %v702
      %v711 = vadd.f32 %v624, %v707
      %v712 = vld [vmem:[%s183 + $0xc] sm:$0xff]
      %v713 = vld [vmem:[%s183 + $0x14] sm:$0xff]
      %s714 = scalar_lea.vmem %s1, 48
      %v715 = vld [vmem:[%s714] sm:$0xff]
      %v717 = vsel %vm201, %v712, 0
      %v720 = vsel %vm201, %v713, 0
      %722 = vmatprep.subr.mxu0 0.0
      %723 = vmatpush1.msra.mxu0 %v715
      %724 = vmatprep.subr.mxu0 0.0
      %725 = vmatpush1.msra.mxu0 0.0
      %726 = vmatprep.subr.mxu0 0.0
      %727 = vmatpush1.msra.mxu0 0.0
      %728 = vmatprep.subr.mxu0 0.0
      %729 = vmatpush1.msra.mxu0 0.0
      %730 = vmatprep.subr.mxu0 0.0
      %731 = vmatpush1.msra.mxu0 0.0
      %732 = vmatprep.subr.mxu0 0.0
      %733 = vmatpush1.msra.mxu0 0.0
      %734 = vmatprep.subr.mxu0 0.0
      %735 = vmatpush1.msra.mxu0 0.0
      %736 = vmatprep.subr.mxu0 0.0
      %737 = vmatpush1.msra.mxu0 0.0
      %738 = vmatprep.subr.mxu0 0.0
      %739 = vmatpush1.msra.mxu0 0.0
      %740 = vmatprep.subr.mxu0 0.0
      %741 = vmatpush1.msra.mxu0 0.0
      %742 = vmatprep.subr.mxu0 0.0
      %743 = vmatpush1.msra.mxu0 0.0
      %744 = vmatprep.subr.mxu0 0.0
      %745 = vmatpush1.msra.mxu0 0.0
      %746 = vmatprep.subr.mxu0 0.0
      %747 = vmatpush1.msra.mxu0 0.0
      %748 = vmatprep.subr.mxu0 0.0
      %749 = vmatpush1.msra.mxu0 0.0
      %750 = vmatprep.subr.mxu0 0.0
      %751 = vmatpush1.msra.mxu0 0.0
      %752 = vmatprep.subr.mxu0 0.0
      %753 = vmatpush1.msra.mxu0 0.0
      %754 = vmatprep.subr.mxu0 0.0
      %755 = vmatpush1.msra.mxu0 0.0
      %756 = vmatprep.subr.mxu0 0.0
      %757 = vmatpush1.msra.mxu0 0.0
      %758 = vmatprep.subr.mxu0 0.0
      %759 = vmatpush1.msra.mxu0 0.0
      %760 = vmatprep.subr.mxu0 0.0
      %761 = vmatpush1.msra.mxu0 0.0
      %762 = vmatprep.subr.mxu0 0.0
      %763 = vmatpush1.msra.mxu0 0.0
      %764 = vmatprep.subr.mxu0 0.0
      %765 = vmatpush1.msra.mxu0 0.0
      %766 = vmatprep.subr.mxu0 0.0
      %767 = vmatpush1.msra.mxu0 0.0
      %768 = vmatprep.subr.mxu0 0.0
      %769 = vmatpush1.msra.mxu0 0.0
      %770 = vmatprep.subr.mxu0 0.0
      %771 = vmatpush1.msra.mxu0 0.0
      %772 = vmatprep.subr.mxu0 0.0
      %773 = vmatpush1.msra.mxu0 0.0
      %774 = vmatprep.subr.mxu0 0.0
      %775 = vmatpush1.msra.mxu0 0.0
      %776 = vmatprep.subr.mxu0 0.0
      %777 = vmatpush1.msra.mxu0 0.0
      %778 = vmatprep.subr.mxu0 0.0
      %779 = vmatpush1.msra.mxu0 0.0
      %780 = vmatprep.subr.mxu0 0.0
      %781 = vmatpush1.msra.mxu0 0.0
      %782 = vmatprep.subr.mxu0 0.0
      %783 = vmatpush1.msra.mxu0 0.0
      %784 = vmatprep.subr.mxu0 0.0
      %785 = vmatpush1.msra.mxu0 0.0
      %786 = vmatprep.mubr.f32.mxu0 0.0
      %787 = vmatmul.mubr.f32.gmra.mrb[0].mxu0 %v717
      %v788 = vpop.f32.mrb[0].mxu0
      %v789 = vadd.f32 0.0, %v788
      %v790 = vpop.f32.mrb[0].mxu0
      %791 = vmatprep.mubr.f32.mxu0 0.0
      %792 = vmatmul.mubr.f32.gmra.mrb[0].mxu0 %v720
      %v793 = vpop.f32.mrb[0].mxu0
      %v794 = vadd.f32 0.0, %v793
      %v795 = vpop.f32.mrb[0].mxu0
      %796 = vdwg.mxu0
      %v797 = vadd.f32 %v710, %v789
      %v798 = vadd.f32 %v711, %v794
      %v799 = vld [vmem:[%s2] sm:$0x1]
      %v801 = vlaneseq
      %v802 = vshrl.u32 %v801, 7
      %v803 = vsub.s32 0, %v802
      %v804 = vrot.slane %v799, %v803
      %v806 = vadd.f32 %v797, %v804
      %v807 = vadd.f32 %v798, %v804
      %v808 = vmax.f32 %v806, 0.0
      %v809 = vmax.f32 %v807, 0.0
      %vm810 = vcmask 97280
      %811 = vst.msk [vmem:[%s192] sm:$0xff] %vm810, %v808
      %812 = vst.msk [vmem:[%s192 + $0x8] sm:$0xff] %vm810, %v809
      %s813 = smul.u32 2, %s19
      %p814 = scmp.lt.s32.totalorder %s18, 1
      %s815 = scalar_select %p814, %s18, 1
      %p816 = scmp.lt.s32.totalorder %s813, 1
      %s817 = scalar_select %p816, %s813, 1
      %s818 = smul.addr %s815, 2
      %s819 = sadd.s32 %s817, %s818
      %s820 = smul.addr %s819, 8
      %s821 = scalar_lea.vmem %s3, %s820
      // Predicated region
      $region33: #{tpu_custom_call.1} parent=31 // pred_check
        %p822 = pneg %p114
      $region34: #{tpu_custom_call.1} parent=31 // pred_check_branch
        %824 = sbr.rel (%p822) target = $region36
      $region35: #{tpu_custom_call.1} parent=31 // pred_region
        %s825 = smul.u32 2, %s19
      $region36: #{tpu_custom_call.1} parent=31 // pred_fallthru
        _
    $region32: #{tpu_custom_call.1} parent=5 // pred_fallthru
      _
    %p826 = scmp.le.s32.totalorder 2, %s9
    // Predicated region
    $region37: #{tpu_custom_call.1} parent=5 // pred_check
      %p827 = pneg %p826
    $region38: #{tpu_custom_call.1} parent=5 // pred_check_branch
      %829 = sbr.rel (%p827) target = $region40
    $region39: #{tpu_custom_call.1} parent=5 // pred_region
      %s830 = ssub.s32 %s9, 2
      // Predicated region
      $region41: #{tpu_custom_call.1} parent=39 // pred_check
        %p831 = pneg %p120
      $region42: #{tpu_custom_call.1} parent=39 // pred_check_branch
        %833 = sbr.rel (%p831) target = $region44
      $region43: #{tpu_custom_call.1} parent=39 // pred_region
        %s834 = smul.u32 2, %s21
        %p835 = scmp.lt.s32.totalorder %s20, 1
        %s836 = scalar_select %p835, %s20, 1
        %p837 = scmp.lt.s32.totalorder %s834, 1
        %s838 = scalar_select %p837, %s834, 1
        %s839 = smul.addr %s836, 2
        %s840 = sadd.s32 %s838, %s839
        %s841 = smul.addr %s840, 8
        %s842 = scalar_lea.vmem %s3, %s841
      $region44: #{tpu_custom_call.1} parent=39 // pred_fallthru
        _
    $region40: #{tpu_custom_call.1} parent=5 // pred_fallthru
      _
  $region6: #{tpu_custom_call.1} parent=0 // loop_footer
    %s13 = sadd.s32 1, %s9
  $region7: #{tpu_custom_call.1} parent=0 // loop_footer_branch
    %8 = sbr.rel target = $region3
  $region8: #{tpu_custom_call.1} parent=0 // loop_exit
    _

</llo_original>
